<compile_context>
chip_gen: v6e
topology: v6e:2x2x1
jax: 0.10.0
libtpu: 0.0.40
codegen_flags: <defaults>
</compile_context>

<pallas_src>
import jax
import jax.numpy as jnp
from jax import lax
from jax.experimental import pallas as pl
from jax.experimental.pallas import tpu as pltpu

LANES = 128            # lane width; last dim of every tile
MAX_BLOCK_ROWS = 1024  # rows per grid step -> up to 1024*128 = 128K elems (512 KiB f32)
HIDDEN = 10            # hidden width of Linear(1, 10)


def simplenet_kernel(stats_ref, w1_ref, b1_ref, w2_ref, b2_ref, x_ref, o_ref):
    # stats_ref : SMEM f32[2]   = [mean, 1/std]   (global stats hoisted to wrapper)
    # w1_ref    : SMEM f32[10]    Linear(1,10).weight[:, 0]
    # b1_ref    : SMEM f32[10]    Linear(1,10).bias
    # w2_ref    : SMEM f32[10]    Linear(10,1).weight[0, :]
    # b2_ref    : SMEM f32[1]     Linear(10,1).bias
    # x_ref     : VMEM f32[R, 128]  batch elements dense on (sublane, lane)
    # o_ref     : VMEM f32[R, 128]
    mean = stats_ref[0]
    rstd = stats_ref[1]

    xn = (x_ref[...] - mean) * rstd          # z-scored input, (R, 128), pure VPU
    # Single-pass softmax (max-subtraction removed): with z-scored data and
    # |w1|,|b1| ~ O(1) the logits cannot overflow exp(); the clamp also makes junk
    # lanes of a padded edge block harmless (their writes are dropped anyway).
    xn = jnp.clip(xn, -60.0, 60.0)

    # Unrolled loop over the 10 hidden features.  Weights are SMEM scalars, so each
    # feature is one VPU broadcast MAC + one EUP exp + two VPU accum ops; no (10, B)
    # intermediate and no XLU reductions.
    num = jnp.zeros_like(xn)
    den = jnp.zeros_like(xn)
    for f in range(HIDDEN):
        e = jnp.exp(w1_ref[f] * xn + b1_ref[f])
        den = den + e
        num = num + w2_ref[f] * e

    # Softmax denominator fused into Linear(10, 1):
    #   y = (sum_f e_f * w2_f) / (sum_f e_f) + b2
    # Exact reciprocal on purpose: the EUP already carries 10 exps/element, so the
    # approx (EUP) form would add work on the likely-binding slot.
    o_ref[...] = (num * pl.reciprocal(den) + b2_ref[0]).astype(o_ref.dtype)


@jax.jit
def simplenet_forward(x, w1, b1, w2, b2):
    """x: (N, 1).  Params in PyTorch layout: w1 (10,1), b1 (10,), w2 (1,10), b2 (1,)."""
    N = x.shape[0]
    xf = x.reshape(-1).astype(jnp.float32)

    # Single-pass global stats (unbiased std, like torch.std); one HBM read of x.
    # N == 1 gives inf/NaN, matching torch.std(ddof=1) semantics.
    s = jnp.sum(xf)
    ss = jnp.sum(xf * xf)
    mean = s / N
    var = (ss - s * s / N) / (N - 1)
    rstd = lax.rsqrt(var)
    stats = jnp.stack([mean, rstd]).astype(jnp.float32)     # -> SMEM scalars

    # Dense (rows, 128) layout: a free reshape when N is lane-aligned, otherwise a
    # single minimal pad of the trailing partial row (padded elems are elementwise
    # garbage that is sliced off after the call; nothing mixes across elements).
    n_pad = pl.cdiv(N, LANES) * LANES
    if n_pad != N:
        xf = jnp.pad(xf, (0, n_pad - N))
    rows = n_pad // LANES
    x2d = xf.reshape(rows, LANES)

    # Block rows: multiple of 8 when tiling, or the full array when it fits one block.
    block_rows = min(MAX_BLOCK_ROWS, rows)
    grid = (pl.cdiv(rows, block_rows),)

    w1v = w1.reshape(-1).astype(jnp.float32)   # (10,)
    b1v = b1.reshape(-1).astype(jnp.float32)   # (10,)
    w2v = w2.reshape(-1).astype(jnp.float32)   # (10,)
    b2v = b2.reshape(-1).astype(jnp.float32)   # (1,)

    out = pl.pallas_call(
        simplenet_kernel,
        out_shape=jax.ShapeDtypeStruct((rows, LANES), jnp.float32),
        grid=grid,
        in_specs=[
            pl.BlockSpec(memory_space=pltpu.MemorySpace.SMEM),    # stats [mean, 1/std]
            pl.BlockSpec(memory_space=pltpu.MemorySpace.SMEM),    # w1
            pl.BlockSpec(memory_space=pltpu.MemorySpace.SMEM),    # b1
            pl.BlockSpec(memory_space=pltpu.MemorySpace.SMEM),    # w2
            pl.BlockSpec(memory_space=pltpu.MemorySpace.SMEM),    # b2
            pl.BlockSpec((block_rows, LANES), lambda i: (i, 0)),  # x: pipelined tiles
        ],
        out_specs=pl.BlockSpec((block_rows, LANES), lambda i: (i, 0)),  # lane-dense store
        compiler_params=pltpu.CompilerParams(
            dimension_semantics=("parallel",),    # batch tiles are independent (megacore)
        ),
    )(stats, w1v, b1v, w2v, b2v, x2d)

    return out.reshape(-1)[:N].reshape(N, 1).astype(x.dtype)


def make_params(key):
    # nn.Linear default init: U(-1/sqrt(fan_in), +1/sqrt(fan_in)) for weight and bias.
    k1, k2, k3, k4 = jax.random.split(key, 4)
    bound1 = 1.0                      # fan_in = 1
    bound2 = 1.0 / jnp.sqrt(10.0)     # fan_in = 10
    w1 = jax.random.uniform(k1, (10, 1), jnp.float32, -bound1, bound1)   # (out, in)
    b1 = jax.random.uniform(k2, (10,), jnp.float32, -bound1, bound1)
    w2 = jax.random.uniform(k3, (1, 10), jnp.float32, -bound2, bound2)   # (out, in)
    b2 = jax.random.uniform(k4, (1,), jnp.float32, -bound2, bound2)
    return w1, b1, w2, b2


def reference_forward(x, w1, b1, w2, b2):
    # Pure-JAX reference with torch semantics, in (batch, feature) layout.
    xf = x.astype(jnp.float32)
    n = xf.size
    mean = jnp.mean(xf)
    std = jnp.sqrt(jnp.sum((xf - mean) ** 2) / (n - 1))      # unbiased, like torch.std
    xn = (xf - mean) / std                                   # (N, 1)
    h = xn @ w1.T + b1                                       # (N, 10)
    p = jax.nn.softmax(h, axis=1)                            # nn.Softmax() -> dim=1 on 2-D
    return (p @ w2.T + b2).astype(x.dtype)                   # (N, 1)


if __name__ == "__main__":
    key = jax.random.PRNGKey(0)
    kx, kp = jax.random.split(key)

    N = 200  # small demo batch; exercises the non-lane-aligned padding/edge path
    x = jax.random.normal(kx, (N, 1), dtype=jnp.float32)
    w1, b1, w2, b2 = make_params(kp)

    out = simplenet_forward(x, w1, b1, w2, b2)
    out = jax.block_until_ready(out)

    ref = reference_forward(x, w1, b1, w2, b2)
    assert out.shape == (N, 1)
    assert jnp.allclose(out, ref, atol=1e-5, rtol=1e-5), float(jnp.max(jnp.abs(out - ref)))

    print("KERNEL_OK")
</pallas_src>

<mosaic_0001>
module attributes {stable_mosaic.version = 11 : i64} {
  func.func @simplenet_kernel(%arg0: i32, %arg1: memref<2xf32, #tpu.memory_space<smem>>, %arg2: memref<10xf32, #tpu.memory_space<smem>>, %arg3: memref<10xf32, #tpu.memory_space<smem>>, %arg4: memref<10xf32, #tpu.memory_space<smem>>, %arg5: memref<1xf32, #tpu.memory_space<smem>>, %arg6: memref<2x128xf32, #tpu.memory_space<vmem>>, %arg7: memref<2x128xf32, #tpu.memory_space<vmem>>) attributes {dimension_semantics = [#tpu.dimension_semantics<parallel>], iteration_bounds = array<i64: 1>, scalar_prefetch = 0 : i64, scratch_operands = 0 : i64, tpu.core_type = #tpu.core_type<tc>, window_params = [{transform_indices = @transform_0, window_bounds = array<i64: 2>}, {transform_indices = @transform_1, window_bounds = array<i64: 10>}, {transform_indices = @transform_2, window_bounds = array<i64: 10>}, {transform_indices = @transform_3, window_bounds = array<i64: 10>}, {transform_indices = @transform_4, window_bounds = array<i64: 1>}, {transform_indices = @transform_5, window_bounds = array<i64: 2, 128>}, {transform_indices = @transform_6, window_bounds = array<i64: 2, 128>}]} {
    %c0 = arith.constant 0 : index
    %0 = memref.load %arg1[%c0] : memref<2xf32, #tpu.memory_space<smem>>
    %c1 = arith.constant 1 : index
    %1 = memref.load %arg1[%c1] : memref<2xf32, #tpu.memory_space<smem>>
    %c0_0 = arith.constant 0 : index
    %c0_1 = arith.constant 0 : index
    %2 = vector.load %arg6[%c0_0, %c0_1] : memref<2x128xf32, #tpu.memory_space<vmem>>, vector<2x128xf32>
    %3 = vector.broadcast %0 : f32 to vector<2x128xf32>
    %4 = arith.subf %2, %3 : vector<2x128xf32>
    %5 = vector.broadcast %1 : f32 to vector<2x128xf32>
    %6 = arith.mulf %4, %5 : vector<2x128xf32>
    %cst = arith.constant -6.000000e+01 : f32
    %cst_2 = arith.constant 6.000000e+01 : f32
    %7 = vector.broadcast %cst : f32 to vector<2x128xf32>
    %8 = arith.maximumf %7, %6 : vector<2x128xf32>
    %9 = vector.broadcast %cst_2 : f32 to vector<2x128xf32>
    %10 = arith.minimumf %9, %8 : vector<2x128xf32>
    %cst_3 = arith.constant 0.000000e+00 : f32
    %11 = vector.broadcast %cst_3 : f32 to vector<2x128xf32>
    %cst_4 = arith.constant 0.000000e+00 : f32
    %12 = vector.broadcast %cst_4 : f32 to vector<2x128xf32>
    %c0_5 = arith.constant 0 : index
    %13 = memref.load %arg2[%c0_5] : memref<10xf32, #tpu.memory_space<smem>>
    %14 = vector.broadcast %13 : f32 to vector<2x128xf32>
    %15 = arith.mulf %14, %10 : vector<2x128xf32>
    %c0_6 = arith.constant 0 : index
    %16 = memref.load %arg3[%c0_6] : memref<10xf32, #tpu.memory_space<smem>>
    %17 = vector.broadcast %16 : f32 to vector<2x128xf32>
    %18 = arith.addf %15, %17 : vector<2x128xf32>
    %19 = math.exp %18 : vector<2x128xf32>
    %20 = arith.addf %12, %19 : vector<2x128xf32>
    %c0_7 = arith.constant 0 : index
    %21 = memref.load %arg4[%c0_7] : memref<10xf32, #tpu.memory_space<smem>>
    %22 = vector.broadcast %21 : f32 to vector<2x128xf32>
    %23 = arith.mulf %22, %19 : vector<2x128xf32>
    %24 = arith.addf %11, %23 : vector<2x128xf32>
    %c1_8 = arith.constant 1 : index
    %25 = memref.load %arg2[%c1_8] : memref<10xf32, #tpu.memory_space<smem>>
    %26 = vector.broadcast %25 : f32 to vector<2x128xf32>
    %27 = arith.mulf %26, %10 : vector<2x128xf32>
    %c1_9 = arith.constant 1 : index
    %28 = memref.load %arg3[%c1_9] : memref<10xf32, #tpu.memory_space<smem>>
    %29 = vector.broadcast %28 : f32 to vector<2x128xf32>
    %30 = arith.addf %27, %29 : vector<2x128xf32>
    %31 = math.exp %30 : vector<2x128xf32>
    %32 = arith.addf %20, %31 : vector<2x128xf32>
    %c1_10 = arith.constant 1 : index
    %33 = memref.load %arg4[%c1_10] : memref<10xf32, #tpu.memory_space<smem>>
    %34 = vector.broadcast %33 : f32 to vector<2x128xf32>
    %35 = arith.mulf %34, %31 : vector<2x128xf32>
    %36 = arith.addf %24, %35 : vector<2x128xf32>
    %c2 = arith.constant 2 : index
    %37 = memref.load %arg2[%c2] : memref<10xf32, #tpu.memory_space<smem>>
    %38 = vector.broadcast %37 : f32 to vector<2x128xf32>
    %39 = arith.mulf %38, %10 : vector<2x128xf32>
    %c2_11 = arith.constant 2 : index
    %40 = memref.load %arg3[%c2_11] : memref<10xf32, #tpu.memory_space<smem>>
    %41 = vector.broadcast %40 : f32 to vector<2x128xf32>
    %42 = arith.addf %39, %41 : vector<2x128xf32>
    %43 = math.exp %42 : vector<2x128xf32>
    %44 = arith.addf %32, %43 : vector<2x128xf32>
    %c2_12 = arith.constant 2 : index
    %45 = memref.load %arg4[%c2_12] : memref<10xf32, #tpu.memory_space<smem>>
    %46 = vector.broadcast %45 : f32 to vector<2x128xf32>
    %47 = arith.mulf %46, %43 : vector<2x128xf32>
    %48 = arith.addf %36, %47 : vector<2x128xf32>
    %c3 = arith.constant 3 : index
    %49 = memref.load %arg2[%c3] : memref<10xf32, #tpu.memory_space<smem>>
    %50 = vector.broadcast %49 : f32 to vector<2x128xf32>
    %51 = arith.mulf %50, %10 : vector<2x128xf32>
    %c3_13 = arith.constant 3 : index
    %52 = memref.load %arg3[%c3_13] : memref<10xf32, #tpu.memory_space<smem>>
    %53 = vector.broadcast %52 : f32 to vector<2x128xf32>
    %54 = arith.addf %51, %53 : vector<2x128xf32>
    %55 = math.exp %54 : vector<2x128xf32>
    %56 = arith.addf %44, %55 : vector<2x128xf32>
    %c3_14 = arith.constant 3 : index
    %57 = memref.load %arg4[%c3_14] : memref<10xf32, #tpu.memory_space<smem>>
    %58 = vector.broadcast %57 : f32 to vector<2x128xf32>
    %59 = arith.mulf %58, %55 : vector<2x128xf32>
    %60 = arith.addf %48, %59 : vector<2x128xf32>
    %c4 = arith.constant 4 : index
    %61 = memref.load %arg2[%c4] : memref<10xf32, #tpu.memory_space<smem>>
    %62 = vector.broadcast %61 : f32 to vector<2x128xf32>
    %63 = arith.mulf %62, %10 : vector<2x128xf32>
    %c4_15 = arith.constant 4 : index
    %64 = memref.load %arg3[%c4_15] : memref<10xf32, #tpu.memory_space<smem>>
    %65 = vector.broadcast %64 : f32 to vector<2x128xf32>
    %66 = arith.addf %63, %65 : vector<2x128xf32>
    %67 = math.exp %66 : vector<2x128xf32>
    %68 = arith.addf %56, %67 : vector<2x128xf32>
    %c4_16 = arith.constant 4 : index
    %69 = memref.load %arg4[%c4_16] : memref<10xf32, #tpu.memory_space<smem>>
    %70 = vector.broadcast %69 : f32 to vector<2x128xf32>
    %71 = arith.mulf %70, %67 : vector<2x128xf32>
    %72 = arith.addf %60, %71 : vector<2x128xf32>
    %c5 = arith.constant 5 : index
    %73 = memref.load %arg2[%c5] : memref<10xf32, #tpu.memory_space<smem>>
    %74 = vector.broadcast %73 : f32 to vector<2x128xf32>
    %75 = arith.mulf %74, %10 : vector<2x128xf32>
    %c5_17 = arith.constant 5 : index
    %76 = memref.load %arg3[%c5_17] : memref<10xf32, #tpu.memory_space<smem>>
    %77 = vector.broadcast %76 : f32 to vector<2x128xf32>
    %78 = arith.addf %75, %77 : vector<2x128xf32>
    %79 = math.exp %78 : vector<2x128xf32>
    %80 = arith.addf %68, %79 : vector<2x128xf32>
    %c5_18 = arith.constant 5 : index
    %81 = memref.load %arg4[%c5_18] : memref<10xf32, #tpu.memory_space<smem>>
    %82 = vector.broadcast %81 : f32 to vector<2x128xf32>
    %83 = arith.mulf %82, %79 : vector<2x128xf32>
    %84 = arith.addf %72, %83 : vector<2x128xf32>
    %c6 = arith.constant 6 : index
    %85 = memref.load %arg2[%c6] : memref<10xf32, #tpu.memory_space<smem>>
    %86 = vector.broadcast %85 : f32 to vector<2x128xf32>
    %87 = arith.mulf %86, %10 : vector<2x128xf32>
    %c6_19 = arith.constant 6 : index
    %88 = memref.load %arg3[%c6_19] : memref<10xf32, #tpu.memory_space<smem>>
    %89 = vector.broadcast %88 : f32 to vector<2x128xf32>
    %90 = arith.addf %87, %89 : vector<2x128xf32>
    %91 = math.exp %90 : vector<2x128xf32>
    %92 = arith.addf %80, %91 : vector<2x128xf32>
    %c6_20 = arith.constant 6 : index
    %93 = memref.load %arg4[%c6_20] : memref<10xf32, #tpu.memory_space<smem>>
    %94 = vector.broadcast %93 : f32 to vector<2x128xf32>
    %95 = arith.mulf %94, %91 : vector<2x128xf32>
    %96 = arith.addf %84, %95 : vector<2x128xf32>
    %c7 = arith.constant 7 : index
    %97 = memref.load %arg2[%c7] : memref<10xf32, #tpu.memory_space<smem>>
    %98 = vector.broadcast %97 : f32 to vector<2x128xf32>
    %99 = arith.mulf %98, %10 : vector<2x128xf32>
    %c7_21 = arith.constant 7 : index
    %100 = memref.load %arg3[%c7_21] : memref<10xf32, #tpu.memory_space<smem>>
    %101 = vector.broadcast %100 : f32 to vector<2x128xf32>
    %102 = arith.addf %99, %101 : vector<2x128xf32>
    %103 = math.exp %102 : vector<2x128xf32>
    %104 = arith.addf %92, %103 : vector<2x128xf32>
    %c7_22 = arith.constant 7 : index
    %105 = memref.load %arg4[%c7_22] : memref<10xf32, #tpu.memory_space<smem>>
    %106 = vector.broadcast %105 : f32 to vector<2x128xf32>
    %107 = arith.mulf %106, %103 : vector<2x128xf32>
    %108 = arith.addf %96, %107 : vector<2x128xf32>
    %c8 = arith.constant 8 : index
    %109 = memref.load %arg2[%c8] : memref<10xf32, #tpu.memory_space<smem>>
    %110 = vector.broadcast %109 : f32 to vector<2x128xf32>
    %111 = arith.mulf %110, %10 : vector<2x128xf32>
    %c8_23 = arith.constant 8 : index
    %112 = memref.load %arg3[%c8_23] : memref<10xf32, #tpu.memory_space<smem>>
    %113 = vector.broadcast %112 : f32 to vector<2x128xf32>
    %114 = arith.addf %111, %113 : vector<2x128xf32>
    %115 = math.exp %114 : vector<2x128xf32>
    %116 = arith.addf %104, %115 : vector<2x128xf32>
    %c8_24 = arith.constant 8 : index
    %117 = memref.load %arg4[%c8_24] : memref<10xf32, #tpu.memory_space<smem>>
    %118 = vector.broadcast %117 : f32 to vector<2x128xf32>
    %119 = arith.mulf %118, %115 : vector<2x128xf32>
    %120 = arith.addf %108, %119 : vector<2x128xf32>
    %c9 = arith.constant 9 : index
    %121 = memref.load %arg2[%c9] : memref<10xf32, #tpu.memory_space<smem>>
    %122 = vector.broadcast %121 : f32 to vector<2x128xf32>
    %123 = arith.mulf %122, %10 : vector<2x128xf32>
    %c9_25 = arith.constant 9 : index
    %124 = memref.load %arg3[%c9_25] : memref<10xf32, #tpu.memory_space<smem>>
    %125 = vector.broadcast %124 : f32 to vector<2x128xf32>
    %126 = arith.addf %123, %125 : vector<2x128xf32>
    %127 = math.exp %126 : vector<2x128xf32>
    %128 = arith.addf %116, %127 : vector<2x128xf32>
    %c9_26 = arith.constant 9 : index
    %129 = memref.load %arg4[%c9_26] : memref<10xf32, #tpu.memory_space<smem>>
    %130 = vector.broadcast %129 : f32 to vector<2x128xf32>
    %131 = arith.mulf %130, %127 : vector<2x128xf32>
    %132 = arith.addf %120, %131 : vector<2x128xf32>
    %133 = tpu.reciprocal %128 : vector<2x128xf32> -> vector<2x128xf32>
    %134 = arith.mulf %132, %133 : vector<2x128xf32>
    %c0_27 = arith.constant 0 : index
    %135 = memref.load %arg5[%c0_27] : memref<1xf32, #tpu.memory_space<smem>>
    %136 = vector.broadcast %135 : f32 to vector<2x128xf32>
    %137 = arith.addf %134, %136 : vector<2x128xf32>
    %c0_28 = arith.constant 0 : index
    %c0_29 = arith.constant 0 : index
    %138 = vector.load %arg7[%c0_28, %c0_29] : memref<2x128xf32, #tpu.memory_space<vmem>>, vector<2x128xf32>
    tpu.vector_store %arg7[%c0_28, %c0_29], %137 {strides = array<i32>} : memref<2x128xf32, #tpu.memory_space<vmem>>, vector<2x128xf32>,
    return
  }
  func.func @transform_0(%arg0: i32) -> i32 {
    %c0_i32 = arith.constant 0 : i32
    %c0_i32_0 = arith.constant 0 : i32
    return %c0_i32 : i32
  }
  func.func @transform_1(%arg0: i32) -> i32 {
    %c0_i32 = arith.constant 0 : i32
    %c0_i32_0 = arith.constant 0 : i32
    return %c0_i32 : i32
  }
  func.func @transform_2(%arg0: i32) -> i32 {
    %c0_i32 = arith.constant 0 : i32
    %c0_i32_0 = arith.constant 0 : i32
    return %c0_i32 : i32
  }
  func.func @transform_3(%arg0: i32) -> i32 {
    %c0_i32 = arith.constant 0 : i32
    %c0_i32_0 = arith.constant 0 : i32
    return %c0_i32 : i32
  }
  func.func @transform_4(%arg0: i32) -> i32 {
    %c0_i32 = arith.constant 0 : i32
    %c0_i32_0 = arith.constant 0 : i32
    return %c0_i32 : i32
  }
  func.func @transform_5(%arg0: i32) -> (i32, i32) {
    %c0_i32 = arith.constant 0 : i32
    %c0_i32_0 = arith.constant 0 : i32
    return %arg0, %c0_i32 : i32, i32
  }
  func.func @transform_6(%arg0: i32) -> (i32, i32) {
    %c0_i32 = arith.constant 0 : i32
    %c0_i32_0 = arith.constant 0 : i32
    return %arg0, %c0_i32 : i32, i32
  }
}

</mosaic_0001>

<llo_original>
// kernel: simplenet_forward.1
$region0: #{simplenet_forward.1}
  #allocation0 [shape = 'u32[]', space=smem, size = 0x4, offset = 0x4, fixed_abs, tag = 'smem constant byte address 0x4 - core index']
  #allocation1 [shape = 'u32[144,128]{1,0:T(1,128)}', space=vmem, size = 0x12000, scoped, tag = 'internal scratch']
  #allocation2 [shape = 'f32[1]{0:T(128)S(6)}', space=smem, size = 0x200, scoped, tag = 'scoped memory for simplenet_forward.1']
  %s0 = inlined_call_operand.vmem [shape: f32[2], index: 0, kind: input, shape index: {}]
  %s1 = inlined_call_operand.vmem [shape: f32[10], index: 1, kind: input, shape index: {}]
  %s2 = inlined_call_operand.vmem [shape: f32[10], index: 2, kind: input, shape index: {}]
  %s3 = inlined_call_operand.vmem [shape: f32[10], index: 3, kind: input, shape index: {}]
  %s4 = inlined_call_operand.<no memory space> [shape: f32[1], index: 4, kind: input, shape index: {}]
  %s5 = inlined_call_operand.vmem [shape: f32[2,128], index: 5, kind: input, shape index: {}]
  %s6 = inlined_call_operand.hbm [shape: f32[2,128], index: 6, kind: output, shape index: {}]
  %s7 = sld [smem:[#allocation0]]
  $region50: #{simplenet_forward.1} parent=0
    _
  %s9 = ssub.s32 1, %s7
  %s10 = scalar_select 0, %s9, %s7
  %11 = sst [smem:[#allocation2]] %s4
  $region1: #{simplenet_forward.1} parent=0
    #allocation3 [shape = 'u8[512]{0}', space=smem, size = 0x200, scoped, tag = 'input window, operand 0, single buffered']
    #allocation4 [shape = 's32[1]{0}', space=sflag, size = 0x4, scoped, tag = 'scoped memory for simplenet_forward.1']
    #allocation5 [shape = 's32[1]{0}', space=sflag, size = 0x4, scoped, tag = 'scoped memory for simplenet_forward.1']
    #allocation6 [shape = 'u8[512]{0}', space=smem, size = 0x200, scoped, tag = 'input window, operand 1, single buffered']
    #allocation7 [shape = 's32[1]{0}', space=sflag, size = 0x4, scoped, tag = 'scoped memory for simplenet_forward.1']
    #allocation8 [shape = 'u8[512]{0}', space=smem, size = 0x200, scoped, tag = 'input window, operand 2, single buffered']
    #allocation9 [shape = 'u8[512]{0}', space=smem, size = 0x200, scoped, tag = 'input window, operand 3, single buffered']
    #allocation10 [shape = 's32[1]{0}', space=sflag, size = 0x4, scoped, tag = 'scoped memory for simplenet_forward.1']
    #allocation11 [shape = 'u8[1024]{0}', space=vmem, size = 0x400, scoped, tag = 'output window, operand 0, single buffered']
    %12 = vsyncpa [#allocation5], 0
    %13 = vsyncpa [#allocation7], 0
    %14 = vsyncpa [#allocation10], 0
    %15 = vsyncpa [#allocation4], 0
    // Predicated region
    $region2: #{simplenet_forward.1} parent=1 // pred_check
      _
    $region3: #{simplenet_forward.1} parent=1 // pred_check_branch
      %17 = sbr.rel (0) target = $region5
    $region4: #{simplenet_forward.1} parent=1 // pred_region
      %s19 = ssub.s32 16, 16
      %20 = vsyncadd [#allocation5], %s19
      %s22 = sshll.u32 %s0, 4
      %s23 = int_to_ptr.vmem [resolvable:$true] %s22
      %25 = dma.vmem_to_smem %s23, 16, [#allocation3], [#allocation5]
    $region5: #{simplenet_forward.1} parent=1 // pred_fallthru
      _
    // Predicated region
    $region6: #{simplenet_forward.1} parent=1 // pred_check
      _
    $region7: #{simplenet_forward.1} parent=1 // pred_check_branch
      %27 = sbr.rel (0) target = $region9
    $region8: #{simplenet_forward.1} parent=1 // pred_region
      %s29 = ssub.s32 16, 16
      %30 = vsyncadd [#allocation7], %s29
      %s32 = sshll.u32 %s1, 4
      %s33 = int_to_ptr.vmem [resolvable:$true] %s32
      %35 = dma.vmem_to_smem %s33, 16, [#allocation6], [#allocation7]
    $region9: #{simplenet_forward.1} parent=1 // pred_fallthru
      _
    // Predicated region
    $region10: #{simplenet_forward.1} parent=1 // pred_check
      _
    $region11: #{simplenet_forward.1} parent=1 // pred_check_branch
      %37 = sbr.rel (0) target = $region13
    $region12: #{simplenet_forward.1} parent=1 // pred_region
      %s39 = ssub.s32 16, 16
      %40 = vsyncadd [#allocation7], %s39
      %s42 = sshll.u32 %s2, 4
      %s43 = int_to_ptr.vmem [resolvable:$true] %s42
      %45 = dma.vmem_to_smem %s43, 16, [#allocation8], [#allocation7]
    $region13: #{simplenet_forward.1} parent=1 // pred_fallthru
      _
    // Predicated region
    $region14: #{simplenet_forward.1} parent=1 // pred_check
      _
    $region15: #{simplenet_forward.1} parent=1 // pred_check_branch
      %47 = sbr.rel (0) target = $region17
    $region16: #{simplenet_forward.1} parent=1 // pred_region
      %s49 = ssub.s32 16, 16
      %50 = vsyncadd [#allocation10], %s49
      %s52 = sshll.u32 %s3, 4
      %s53 = int_to_ptr.vmem [resolvable:$true] %s52
      %55 = dma.vmem_to_smem %s53, 16, [#allocation9], [#allocation10]
    $region17: #{simplenet_forward.1} parent=1 // pred_fallthru
      _
    // Predicated region
    $region18: #{simplenet_forward.1} parent=1 // pred_check
      _
    $region19: #{simplenet_forward.1} parent=1 // pred_check_branch
      %57 = sbr.rel (0) target = $region21
    $region20: #{simplenet_forward.1} parent=1 // pred_region
      _
    $region21: #{simplenet_forward.1} parent=1 // pred_fallthru
      _
    // Predicated region
    $region22: #{simplenet_forward.1} parent=1 // pred_check
      _
    $region23: #{simplenet_forward.1} parent=1 // pred_check_branch
      %59 = sbr.rel (0) target = $region25
    $region24: #{simplenet_forward.1} parent=1 // pred_region
      _
    $region25: #{simplenet_forward.1} parent=1 // pred_fallthru
      _
    // Predicated region
    $region26: #{simplenet_forward.1} parent=1 // pred_check
      _
    $region27: #{simplenet_forward.1} parent=1 // pred_check_branch
      %61 = sbr.rel (0) target = $region29
    $region28: #{simplenet_forward.1} parent=1 // pred_region
      %62 = dma.done [#allocation5], 16
    $region29: #{simplenet_forward.1} parent=1 // pred_fallthru
      _
    // Predicated region
    $region30: #{simplenet_forward.1} parent=1 // pred_check
      _
    $region31: #{simplenet_forward.1} parent=1 // pred_check_branch
      %64 = sbr.rel (0) target = $region33
    $region32: #{simplenet_forward.1} parent=1 // pred_region
      %65 = dma.done [#allocation7], 16
    $region33: #{simplenet_forward.1} parent=1 // pred_fallthru
      _
    // Predicated region
    $region34: #{simplenet_forward.1} parent=1 // pred_check
      _
    $region35: #{simplenet_forward.1} parent=1 // pred_check_branch
      %67 = sbr.rel (0) target = $region37
    $region36: #{simplenet_forward.1} parent=1 // pred_region
      %68 = dma.done [#allocation7], 16
    $region37: #{simplenet_forward.1} parent=1 // pred_fallthru
      _
    // Predicated region
    $region38: #{simplenet_forward.1} parent=1 // pred_check
      _
    $region39: #{simplenet_forward.1} parent=1 // pred_check_branch
      %70 = sbr.rel (0) target = $region41
    $region40: #{simplenet_forward.1} parent=1 // pred_region
      %71 = dma.done [#allocation10], 16
    $region41: #{simplenet_forward.1} parent=1 // pred_fallthru
      _
    %72 = sfence
    %s73 = sld [smem:[#allocation3]]
    %s74 = sld [smem:[#allocation3 + $0x1]]
    %v75 = vld [vmem:[%s5] sm:$0x3]
    %v76 = vstv %s73
    %v77 = vsub.f32 %v75, %v76
    %v78 = vstv %s74
    %v79 = vmul.f32 %v77, %v78
    %v80 = vmax.f32 %v79, -60.0
    %v81 = vmin.f32 %v80, 60.0
    %s82 = sld [smem:[#allocation6]]
    %v83 = vstv %s82
    %v84 = vmul.f32 %v83, %v81
    %s85 = sld [smem:[#allocation8]]
    %v86 = vstv %s85
    %v87 = vadd.f32 %v84, %v86
    %v88 = vmul.f32 %v87, 1.442695
    %v89 = vpow.pop %v88
    %v90 = vadd.f32 %v89, 0.0
    %s91 = sld [smem:[#allocation9]]
    %v92 = vstv %s91
    %v93 = vmul.f32 %v92, %v89
    %v94 = vadd.f32 %v93, 0.0
    %s95 = sld [smem:[#allocation6 + $0x1]]
    %v96 = vstv %s95
    %v97 = vmul.f32 %v96, %v81
    %s98 = sld [smem:[#allocation8 + $0x1]]
    %v99 = vstv %s98
    %v100 = vadd.f32 %v97, %v99
    %v101 = vmul.f32 %v100, 1.442695
    %v102 = vpow.pop %v101
    %v103 = vadd.f32 %v90, %v102
    %s104 = sld [smem:[#allocation9 + $0x1]]
    %v105 = vstv %s104
    %v106 = vmul.f32 %v105, %v102
    %v107 = vadd.f32 %v94, %v106
    %s108 = sld [smem:[#allocation6 + $0x2]]
    %v109 = vstv %s108
    %v110 = vmul.f32 %v109, %v81
    %s111 = sld [smem:[#allocation8 + $0x2]]
    %v112 = vstv %s111
    %v113 = vadd.f32 %v110, %v112
    %v114 = vmul.f32 %v113, 1.442695
    %v115 = vpow.pop %v114
    %v116 = vadd.f32 %v103, %v115
    %s117 = sld [smem:[#allocation9 + $0x2]]
    %v118 = vstv %s117
    %v119 = vmul.f32 %v118, %v115
    %v120 = vadd.f32 %v107, %v119
    %s121 = sld [smem:[#allocation6 + $0x3]]
    %v122 = vstv %s121
    %v123 = vmul.f32 %v122, %v81
    %s124 = sld [smem:[#allocation8 + $0x3]]
    %v125 = vstv %s124
    %v126 = vadd.f32 %v123, %v125
    %v127 = vmul.f32 %v126, 1.442695
    %v128 = vpow.pop %v127
    %v129 = vadd.f32 %v116, %v128
    %s130 = sld [smem:[#allocation9 + $0x3]]
    %v131 = vstv %s130
    %v132 = vmul.f32 %v131, %v128
    %v133 = vadd.f32 %v120, %v132
    %s134 = sld [smem:[#allocation6 + $0x4]]
    %v135 = vstv %s134
    %v136 = vmul.f32 %v135, %v81
    %s137 = sld [smem:[#allocation8 + $0x4]]
    %v138 = vstv %s137
    %v139 = vadd.f32 %v136, %v138
    %v140 = vmul.f32 %v139, 1.442695
    %v141 = vpow.pop %v140
    %v142 = vadd.f32 %v129, %v141
    %s143 = sld [smem:[#allocation9 + $0x4]]
    %v144 = vstv %s143
    %v145 = vmul.f32 %v144, %v141
    %v146 = vadd.f32 %v133, %v145
    %s147 = sld [smem:[#allocation6 + $0x5]]
    %v148 = vstv %s147
    %v149 = vmul.f32 %v148, %v81
    %s150 = sld [smem:[#allocation8 + $0x5]]
    %v151 = vstv %s150
    %v152 = vadd.f32 %v149, %v151
    %v153 = vmul.f32 %v152, 1.442695
    %v154 = vpow.pop %v153
    %v155 = vadd.f32 %v142, %v154
    %s156 = sld [smem:[#allocation9 + $0x5]]
    %v157 = vstv %s156
    %v158 = vmul.f32 %v157, %v154
    %v159 = vadd.f32 %v146, %v158
    %s160 = sld [smem:[#allocation6 + $0x6]]
    %v161 = vstv %s160
    %v162 = vmul.f32 %v161, %v81
    %s163 = sld [smem:[#allocation8 + $0x6]]
    %v164 = vstv %s163
    %v165 = vadd.f32 %v162, %v164
    %v166 = vmul.f32 %v165, 1.442695
    %v167 = vpow.pop %v166
    %v168 = vadd.f32 %v155, %v167
    %s169 = sld [smem:[#allocation9 + $0x6]]
    %v170 = vstv %s169
    %v171 = vmul.f32 %v170, %v167
    %v172 = vadd.f32 %v159, %v171
    %s173 = sld [smem:[#allocation6 + $0x7]]
    %v174 = vstv %s173
    %v175 = vmul.f32 %v174, %v81
    %s176 = sld [smem:[#allocation8 + $0x7]]
    %v177 = vstv %s176
    %v178 = vadd.f32 %v175, %v177
    %v179 = vmul.f32 %v178, 1.442695
    %v180 = vpow.pop %v179
    %v181 = vadd.f32 %v168, %v180
    %s182 = sld [smem:[#allocation9 + $0x7]]
    %v183 = vstv %s182
    %v184 = vmul.f32 %v183, %v180
    %v185 = vadd.f32 %v172, %v184
    %s186 = sld [smem:[#allocation6 + $0x8]]
    %v187 = vstv %s186
    %v188 = vmul.f32 %v187, %v81
    %s189 = sld [smem:[#allocation8 + $0x8]]
    %v190 = vstv %s189
    %v191 = vadd.f32 %v188, %v190
    %v192 = vmul.f32 %v191, 1.442695
    %v193 = vpow.pop %v192
    %v194 = vadd.f32 %v181, %v193
    %s195 = sld [smem:[#allocation9 + $0x8]]
    %v196 = vstv %s195
    %v197 = vmul.f32 %v196, %v193
    %v198 = vadd.f32 %v185, %v197
    %s199 = sld [smem:[#allocation6 + $0x9]]
    %v200 = vstv %s199
    %v201 = vmul.f32 %v200, %v81
    %s202 = sld [smem:[#allocation8 + $0x9]]
    %v203 = vstv %s202
    %v204 = vadd.f32 %v201, %v203
    %v205 = vmul.f32 %v204, 1.442695
    %v206 = vpow.pop %v205
    %v207 = vadd.f32 %v194, %v206
    %s208 = sld [smem:[#allocation9 + $0x9]]
    %v209 = vstv %s208
    %v210 = vmul.f32 %v209, %v206
    %v211 = vadd.f32 %v198, %v210
    %v212 = vrcp.pop %v207
    %v213 = vmul.f32 %v211, %v212
    %s214 = sld [smem:[#allocation2]]
    %v215 = vstv %s214
    %v216 = vadd.f32 %v213, %v215
    %217 = vst [vmem:[#allocation11] sm:$0x3] %v216
    // Predicated region
    $region42: #{simplenet_forward.1} parent=1 // pred_check
      _
    $region43: #{simplenet_forward.1} parent=1 // pred_check_branch
      %219 = sbr.rel (0) target = $region45
    $region44: #{simplenet_forward.1} parent=1 // pred_region
      %s221 = ssub.s32 32, 32
      %222 = vsyncadd [#allocation4], %s221
      %s224 = sshll.u32 [#allocation11], 4
      %s225 = int_to_ptr.vmem [resolvable:$true] %s224
      %227 = dma.vmem_to_hbm [thread:$0]  %s225, 32, %s6, [#allocation4]
    $region45: #{simplenet_forward.1} parent=1 // pred_fallthru
      _
    // Predicated region
    $region46: #{simplenet_forward.1} parent=1 // pred_check
      _
    $region47: #{simplenet_forward.1} parent=1 // pred_check_branch
      %229 = sbr.rel (0) target = $region49
    $region48: #{simplenet_forward.1} parent=1 // pred_region
      %230 = dma.done [#allocation4], 32
    $region49: #{simplenet_forward.1} parent=1 // pred_fallthru
      _
    %231 = vsyncpa [#allocation4], 1
    %232 = vsyncpa [#allocation5], 1
    %233 = vsyncpa [#allocation7], 1
    %234 = vsyncpa [#allocation10], 1

</llo_original>
